<compile_context>
chip_gen: v7x
topology: tpu7x:2x2x1
jax: 0.10.0
libtpu: 0.0.40
codegen_flags: <defaults>
</compile_context>

<pallas_src>
import functools

import jax
import jax.numpy as jnp
from jax.experimental import pallas as pl
from jax.experimental.pallas import tpu as pltpu


def _mha_kernel(x_ref, wqkv_ref, bqkv_ref, wf_ref, bf_ref, o_ref, ctx_ref,
                *, n_heads, head_dim, seq_len):
    R, H = x_ref.shape            # R = TB * S rows of the flattened slab
    S = seq_len
    TB = R // S

    x = x_ref[...]                # bf16 (R, H)

    # Fused Q/K/V projection: (R, H) @ (H, 3H) + bias.  1/scale is already
    # folded into the Q columns of wqkv / bqkv.  f32 accumulation, then cast
    # to bf16 immediately so the f32 slab's live range ends here.
    qkv = (jnp.dot(x, wqkv_ref[...], preferred_element_type=jnp.float32)
           + bqkv_ref[...]).astype(jnp.bfloat16)          # (R, 3H)

    # Per-head attention.  Each head's context is written straight into the
    # f32 VMEM scratch slab (no concat, no list of live intermediates).
    for h in range(n_heads):
        d0 = h * head_dim
        q_h = qkv[:, d0:d0 + head_dim].reshape(TB, S, head_dim)
        k_h = qkv[:, H + d0:H + d0 + head_dim].reshape(TB, S, head_dim)
        v_h = qkv[:, 2 * H + d0:2 * H + d0 + head_dim].reshape(TB, S, head_dim)

        # scores: (TB, S, S), f32
        s_h = jnp.einsum('bqd,bkd->bqk', q_h, k_h,
                         preferred_element_type=jnp.float32)

        # numerically-stable softmax numerator in f32
        m_h = jnp.max(s_h, axis=-1, keepdims=True)
        e_h = jnp.exp(s_h - m_h)
        denom = jnp.sum(e_h, axis=-1, keepdims=True)       # (TB, S, 1)

        # Deferred normalization: attn @ V on un-normalized weights, then one
        # EUP reciprocal + a (TB, S, d) multiply instead of S x S divides.
        ctx_h = jnp.einsum('bqk,bkd->bqd', e_h.astype(jnp.bfloat16), v_h,
                           preferred_element_type=jnp.float32)
        ctx_h = ctx_h * pl.reciprocal(denom, approx=True)

        # Head-major merge order matches PyTorch's permute(0,2,1,3).view(...).
        ctx_ref[:, d0:d0 + head_dim] = ctx_h.reshape(R, head_dim)

    # Output projection on the merged slab (single big MXU matmul).
    out = jnp.dot(ctx_ref[...].astype(jnp.bfloat16), wf_ref[...],
                  preferred_element_type=jnp.float32) + bf_ref[...]
    o_ref[...] = out.astype(o_ref.dtype)


def _pick_block_batch(B, S, H, *, target_rows=512, max_rows=1024,
                      vmem_budget=40 * 2**20):
    """Pick batch-elements-per-grid-step TB (row slab = TB*S rows).

    Sized for the smallest VMEM generation (v7x, 64 MiB) and guaranteeing at
    least 2 grid steps when B >= 2 (megacore sharding + pipeline overlap).
    """
    # Rough per-row VMEM bytes: x bf16 (x2 buf) + out f32 (x2) + ctx scratch
    # + qkv bf16 + transient f32 qkv + per-head score tensors.
    per_row = 34 * H + 16 * S
    weight_bytes = 16 * H * H + 16 * H       # double-buffered bf16 wqkv + wf
    rows_cap = max(S, (vmem_budget - weight_bytes) // max(per_row, 1))
    row_budget = min(target_rows, max_rows, rows_cap)
    tb = max(1, int(row_budget) // S)
    if B >= 2:
        tb = min(tb, (B + 1) // 2)           # >= 2 grid steps
    return max(1, min(tb, B))


def multihead_attention(x, params, *, n_heads):
    """x: (B, S, H) float32.  params: dict of weights/biases (see init_params)."""
    B, S, H = x.shape
    assert H % n_heads == 0
    head_dim = H // n_heads
    inv_scale = 1.0 / float(head_dim) ** 0.5

    # Fuse Q/K/V weights into one (H, 3H) matmul, fold 1/scale into the Q
    # columns, and cast weights to bf16 once in the wrapper.
    wqkv = jnp.concatenate([params['wq'] * inv_scale, params['wk'],
                            params['wv']], axis=1).astype(jnp.bfloat16)
    bqkv = jnp.concatenate([params['bq'] * inv_scale, params['bk'],
                            params['bv']], axis=1)          # f32 (1, 3H)
    wf = params['wf'].astype(jnp.bfloat16)
    bf = params['bf']                                        # f32 (1, H)

    TB = _pick_block_batch(B, S, H)
    B_pad = ((B + TB - 1) // TB) * TB

    # bf16 activations, padded batch, flattened to a 2-D (rows, H) slab so the
    # kernel needs no reshapes of the I/O blocks.
    x_bf = x.astype(jnp.bfloat16)
    if B_pad != B:
        pad = jnp.zeros((B_pad - B, S, H), jnp.bfloat16)
        x_bf = jnp.concatenate([x_bf, pad], axis=0)
    x2 = x_bf.reshape(B_pad * S, H)

    grid = (B_pad // TB,)
    rows = TB * S

    kernel = functools.partial(_mha_kernel, n_heads=n_heads,
                               head_dim=head_dim, seq_len=S)

    # Explicit scoped-VMEM limit sized to the per-step footprint, capped for
    # v7x's 64 MiB physical VMEM (safe on v5e/v6e too).
    est = (rows * H * (2 * 2 + 4 * 2 + 4)        # x in (x2) + out (x2) + ctx scratch
           + rows * 3 * H * (4 + 2)              # f32 qkv transient + bf16 qkv
           + rows * S * 4 * 4                    # per-head score/exp tensors
           + 2 * (3 * H * H * 2 + H * H * 2)     # double-buffered bf16 weights
           + 16 * H)                             # biases
    vmem_limit = int(min(48 * 2**20, max(16 * 2**20, 2 * est)))

    # Advisory cost estimate so XLA schedules the custom call sensibly.
    total_rows = B_pad * S
    flops = (2 * total_rows * H * 3 * H                        # fused QKV proj
             + 4 * B_pad * n_heads * S * S * head_dim          # two attn matmuls
             + 2 * total_rows * H * H)                         # fc
    transcendentals = B_pad * n_heads * S * S
    bytes_accessed = (total_rows * H * 2 + total_rows * H * 4
                      + wqkv.size * 2 + wf.size * 2
                      + bqkv.size * 4 + bf.size * 4)
    cost = pl.CostEstimate(flops=flops, transcendentals=transcendentals,
                           bytes_accessed=bytes_accessed)

    out2 = pl.pallas_call(
        kernel,
        out_shape=jax.ShapeDtypeStruct((B_pad * S, H), jnp.float32),
        grid_spec=pltpu.PrefetchScalarGridSpec(
            num_scalar_prefetch=0,
            grid=grid,
            in_specs=[
                pl.BlockSpec((rows, H), lambda b: (b, 0)),      # x row slab
                pl.BlockSpec((H, 3 * H), lambda b: (0, 0)),     # fused W_qkv
                pl.BlockSpec((1, 3 * H), lambda b: (0, 0)),     # fused b_qkv
                pl.BlockSpec((H, H), lambda b: (0, 0)),         # W_fc
                pl.BlockSpec((1, H), lambda b: (0, 0)),         # b_fc
            ],
            out_specs=pl.BlockSpec((rows, H), lambda b: (b, 0)),
            scratch_shapes=[pltpu.VMEM((rows, H), jnp.float32)],  # ctx slab
        ),
        compiler_params=pltpu.CompilerParams(
            dimension_semantics=("parallel",),
            vmem_limit_bytes=vmem_limit),
        cost_estimate=cost,
    )(x2, wqkv, bqkv, wf, bf)

    return out2.reshape(B_pad, S, H)[:B]


def init_params(key, hid_dim):
    """Deterministic init mimicking nn.Linear default (uniform ±1/sqrt(fan_in)).

    Weights are stored transposed relative to PyTorch, i.e. shape
    (in_features, out_features), so y = x @ W + b.  Biases are (1, hid_dim).
    """
    bound = 1.0 / (hid_dim ** 0.5)
    keys = jax.random.split(key, 8)

    def u(k, shape):
        return jax.random.uniform(k, shape, jnp.float32, -bound, bound)

    return {
        'wq': u(keys[0], (hid_dim, hid_dim)), 'bq': u(keys[1], (1, hid_dim)),
        'wk': u(keys[2], (hid_dim, hid_dim)), 'bk': u(keys[3], (1, hid_dim)),
        'wv': u(keys[4], (hid_dim, hid_dim)), 'bv': u(keys[5], (1, hid_dim)),
        'wf': u(keys[6], (hid_dim, hid_dim)), 'bf': u(keys[7], (1, hid_dim)),
    }


def reference_mha(x, params, n_heads):
    """Pure-JAX f32 reference matching the PyTorch forward (dropout = identity)."""
    B, S, H = x.shape
    d = H // n_heads
    scale = jnp.sqrt(jnp.float32(d))
    q = x @ params['wq'] + params['bq']
    k = x @ params['wk'] + params['bk']
    v = x @ params['wv'] + params['bv']
    q = q.reshape(B, S, n_heads, d).transpose(0, 2, 1, 3)
    k = k.reshape(B, S, n_heads, d).transpose(0, 2, 1, 3)
    v = v.reshape(B, S, n_heads, d).transpose(0, 2, 1, 3)
    att = jnp.einsum('bhqd,bhkd->bhqk', q, k) / scale
    att = jax.nn.softmax(att, axis=-1)
    ctx = jnp.einsum('bhqk,bhkd->bhqd', att, v)
    ctx = ctx.transpose(0, 2, 1, 3).reshape(B, S, H)
    return ctx @ params['wf'] + params['bf']


if __name__ == "__main__":
    B, S, H, n_heads = 2, 8, 32, 4

    key = jax.random.PRNGKey(0)
    kx, kp = jax.random.split(key)
    x = jax.random.normal(kx, (B, S, H), jnp.float32)
    params = init_params(kp, H)

    out = multihead_attention(x, params, n_heads=n_heads)
    out = jax.block_until_ready(out)

    ref = reference_mha(x, params, n_heads)
    assert out.shape == (B, S, H)
    # bf16 activations / matmul inputs (f32 accumulation) -> loosened tolerance.
    assert jnp.allclose(out, ref, atol=5e-2, rtol=5e-2), "mismatch vs reference"

    print("KERNEL_OK")
</pallas_src>

<mosaic_0001>
module attributes {stable_mosaic.version = 11 : i64} {
  func.func @_mha_kernel(%arg0: i32, %arg1: memref<8x32xbf16, #tpu.memory_space<vmem>>, %arg2: memref<32x96xbf16, #tpu.memory_space<vmem>>, %arg3: memref<1x96xf32, #tpu.memory_space<vmem>>, %arg4: memref<32x32xbf16, #tpu.memory_space<vmem>>, %arg5: memref<1x32xf32, #tpu.memory_space<vmem>>, %arg6: memref<8x32xf32, #tpu.memory_space<vmem>>, %arg7: memref<8x32xf32, #tpu.memory_space<vmem>>) attributes {dimension_semantics = [#tpu.dimension_semantics<parallel>], iteration_bounds = array<i64: 2>, scalar_prefetch = 0 : i64, scratch_operands = 1 : i64, tpu.core_type = #tpu.core_type<tc>, window_params = [{transform_indices = @transform_0, window_bounds = array<i64: 8, 32>}, {pipeline_mode = #tpu.pipeline_mode<synchronous>, transform_indices = @transform_1, window_bounds = array<i64: 32, 96>}, {pipeline_mode = #tpu.pipeline_mode<synchronous>, transform_indices = @transform_2, window_bounds = array<i64: 1, 96>}, {pipeline_mode = #tpu.pipeline_mode<synchronous>, transform_indices = @transform_3, window_bounds = array<i64: 32, 32>}, {pipeline_mode = #tpu.pipeline_mode<synchronous>, transform_indices = @transform_4, window_bounds = array<i64: 1, 32>}, {transform_indices = @transform_5, window_bounds = array<i64: 8, 32>}]} {
    %c0 = arith.constant 0 : index
    %c0_0 = arith.constant 0 : index
    %0 = vector.load %arg1[%c0, %c0_0] : memref<8x32xbf16, #tpu.memory_space<vmem>>, vector<8x32xbf16>
    %c0_1 = arith.constant 0 : index
    %c0_2 = arith.constant 0 : index
    %1 = vector.load %arg2[%c0_1, %c0_2] : memref<32x96xbf16, #tpu.memory_space<vmem>>, vector<32x96xbf16>
    %cst = arith.constant dense<0.000000e+00> : vector<8x96xf32>
    %2 = tpu.matmul %0, %1, %cst {dimension_numbers = #tpu.dot_dimension_numbers<[1], [0], [0], [1], [0, 0, 1, 1], [], []>} : vector<8x32xbf16>, vector<32x96xbf16>, vector<8x96xf32> -> vector<8x96xf32>
    %c0_3 = arith.constant 0 : index
    %c0_4 = arith.constant 0 : index
    %3 = vector.load %arg3[%c0_3, %c0_4] : memref<1x96xf32, #tpu.memory_space<vmem>>, vector<1x96xf32>
    %4 = vector.broadcast %3 : vector<1x96xf32> to vector<8x96xf32>
    %5 = arith.addf %2, %4 : vector<8x96xf32>
    %6 = arith.truncf %5 : vector<8x96xf32> to vector<8x96xbf16>
    %7 = vector.extract_strided_slice %6 {offsets = [0, 0], sizes = [8, 8], strides = [1, 1]} : vector<8x96xbf16> to vector<8x8xbf16>
    %8 = vector.shape_cast %7 : vector<8x8xbf16> to vector<1x8x8xbf16>
    %9 = vector.extract_strided_slice %6 {offsets = [0, 32], sizes = [8, 8], strides = [1, 1]} : vector<8x96xbf16> to vector<8x8xbf16>
    %10 = vector.shape_cast %9 : vector<8x8xbf16> to vector<1x8x8xbf16>
    %11 = vector.extract_strided_slice %6 {offsets = [0, 64], sizes = [8, 8], strides = [1, 1]} : vector<8x96xbf16> to vector<8x8xbf16>
    %12 = vector.shape_cast %11 : vector<8x8xbf16> to vector<1x8x8xbf16>
    "tpu.trace_start"() <{level = 10 : i32, message = "bqd,bkd->bqk"}> : () -> ()
    %cst_5 = arith.constant dense<0.000000e+00> : vector<1x8x8xf32>
    %13 = tpu.matmul %8, %10, %cst_5 {dimension_numbers = #tpu.dot_dimension_numbers<[2], [2], [1], [1], [0, 0, 0, 1, 1, 1], [0], [0]>} : vector<1x8x8xbf16>, vector<1x8x8xbf16>, vector<1x8x8xf32> -> vector<1x8x8xf32>
    "tpu.trace_stop"() : () -> ()
    %cst_6 = arith.constant dense<0xFF800000> : vector<1x8xf32>
    %14 = vector.multi_reduction <maximumf>, %13, %cst_6 [2] : vector<1x8x8xf32> to vector<1x8xf32>
    %15 = vector.shape_cast %14 : vector<1x8xf32> to vector<1x8x1xf32>
    %16 = vector.broadcast %15 : vector<1x8x1xf32> to vector<1x8x8xf32>
    %17 = arith.subf %13, %16 : vector<1x8x8xf32>
    %18 = math.exp %17 : vector<1x8x8xf32>
    %cst_7 = arith.constant dense<0.000000e+00> : vector<1x8xf32>
    %19 = vector.multi_reduction <add>, %18, %cst_7 [2] : vector<1x8x8xf32> to vector<1x8xf32>
    %20 = vector.shape_cast %19 : vector<1x8xf32> to vector<1x8x1xf32>
    %21 = arith.truncf %18 : vector<1x8x8xf32> to vector<1x8x8xbf16>
    "tpu.trace_start"() <{level = 10 : i32, message = "bqk,bkd->bqd"}> : () -> ()
    %cst_8 = arith.constant dense<0.000000e+00> : vector<1x8x8xf32>
    %22 = tpu.matmul %21, %12, %cst_8 {dimension_numbers = #tpu.dot_dimension_numbers<[2], [1], [1], [2], [0, 0, 0, 1, 1, 2], [0], [0]>} : vector<1x8x8xbf16>, vector<1x8x8xbf16>, vector<1x8x8xf32> -> vector<1x8x8xf32>
    "tpu.trace_stop"() : () -> ()
    %23 = tpu.reciprocal %20 {approx = true} : vector<1x8x1xf32> -> vector<1x8x1xf32>
    %24 = vector.broadcast %23 : vector<1x8x1xf32> to vector<1x8x8xf32>
    %25 = arith.mulf %22, %24 : vector<1x8x8xf32>
    %26 = vector.shape_cast %25 : vector<1x8x8xf32> to vector<8x8xf32>
    %c0_9 = arith.constant 0 : index
    %c0_10 = arith.constant 0 : index
    %27 = vector.load %arg7[%c0_9, %c0_10] : memref<8x32xf32, #tpu.memory_space<vmem>>, vector<8x8xf32>
    tpu.vector_store %arg7[%c0_9, %c0_10], %26 {strides = array<i32>} : memref<8x32xf32, #tpu.memory_space<vmem>>, vector<8x8xf32>,
    %28 = vector.extract_strided_slice %6 {offsets = [0, 8], sizes = [8, 8], strides = [1, 1]} : vector<8x96xbf16> to vector<8x8xbf16>
    %29 = vector.shape_cast %28 : vector<8x8xbf16> to vector<1x8x8xbf16>
    %30 = vector.extract_strided_slice %6 {offsets = [0, 40], sizes = [8, 8], strides = [1, 1]} : vector<8x96xbf16> to vector<8x8xbf16>
    %31 = vector.shape_cast %30 : vector<8x8xbf16> to vector<1x8x8xbf16>
    %32 = vector.extract_strided_slice %6 {offsets = [0, 72], sizes = [8, 8], strides = [1, 1]} : vector<8x96xbf16> to vector<8x8xbf16>
    %33 = vector.shape_cast %32 : vector<8x8xbf16> to vector<1x8x8xbf16>
    "tpu.trace_start"() <{level = 10 : i32, message = "bqd,bkd->bqk"}> : () -> ()
    %cst_11 = arith.constant dense<0.000000e+00> : vector<1x8x8xf32>
    %34 = tpu.matmul %29, %31, %cst_11 {dimension_numbers = #tpu.dot_dimension_numbers<[2], [2], [1], [1], [0, 0, 0, 1, 1, 1], [0], [0]>} : vector<1x8x8xbf16>, vector<1x8x8xbf16>, vector<1x8x8xf32> -> vector<1x8x8xf32>
    "tpu.trace_stop"() : () -> ()
    %cst_12 = arith.constant dense<0xFF800000> : vector<1x8xf32>
    %35 = vector.multi_reduction <maximumf>, %34, %cst_12 [2] : vector<1x8x8xf32> to vector<1x8xf32>
    %36 = vector.shape_cast %35 : vector<1x8xf32> to vector<1x8x1xf32>
    %37 = vector.broadcast %36 : vector<1x8x1xf32> to vector<1x8x8xf32>
    %38 = arith.subf %34, %37 : vector<1x8x8xf32>
    %39 = math.exp %38 : vector<1x8x8xf32>
    %cst_13 = arith.constant dense<0.000000e+00> : vector<1x8xf32>
    %40 = vector.multi_reduction <add>, %39, %cst_13 [2] : vector<1x8x8xf32> to vector<1x8xf32>
    %41 = vector.shape_cast %40 : vector<1x8xf32> to vector<1x8x1xf32>
    %42 = arith.truncf %39 : vector<1x8x8xf32> to vector<1x8x8xbf16>
    "tpu.trace_start"() <{level = 10 : i32, message = "bqk,bkd->bqd"}> : () -> ()
    %cst_14 = arith.constant dense<0.000000e+00> : vector<1x8x8xf32>
    %43 = tpu.matmul %42, %33, %cst_14 {dimension_numbers = #tpu.dot_dimension_numbers<[2], [1], [1], [2], [0, 0, 0, 1, 1, 2], [0], [0]>} : vector<1x8x8xbf16>, vector<1x8x8xbf16>, vector<1x8x8xf32> -> vector<1x8x8xf32>
    "tpu.trace_stop"() : () -> ()
    %44 = tpu.reciprocal %41 {approx = true} : vector<1x8x1xf32> -> vector<1x8x1xf32>
    %45 = vector.broadcast %44 : vector<1x8x1xf32> to vector<1x8x8xf32>
    %46 = arith.mulf %43, %45 : vector<1x8x8xf32>
    %47 = vector.shape_cast %46 : vector<1x8x8xf32> to vector<8x8xf32>
    %c0_15 = arith.constant 0 : index
    %c8 = arith.constant 8 : index
    %48 = vector.load %arg7[%c0_15, %c8] : memref<8x32xf32, #tpu.memory_space<vmem>>, vector<8x8xf32>
    tpu.vector_store %arg7[%c0_15, %c8], %47 {strides = array<i32>} : memref<8x32xf32, #tpu.memory_space<vmem>>, vector<8x8xf32>,
    %49 = vector.extract_strided_slice %6 {offsets = [0, 16], sizes = [8, 8], strides = [1, 1]} : vector<8x96xbf16> to vector<8x8xbf16>
    %50 = vector.shape_cast %49 : vector<8x8xbf16> to vector<1x8x8xbf16>
    %51 = vector.extract_strided_slice %6 {offsets = [0, 48], sizes = [8, 8], strides = [1, 1]} : vector<8x96xbf16> to vector<8x8xbf16>
    %52 = vector.shape_cast %51 : vector<8x8xbf16> to vector<1x8x8xbf16>
    %53 = vector.extract_strided_slice %6 {offsets = [0, 80], sizes = [8, 8], strides = [1, 1]} : vector<8x96xbf16> to vector<8x8xbf16>
    %54 = vector.shape_cast %53 : vector<8x8xbf16> to vector<1x8x8xbf16>
    "tpu.trace_start"() <{level = 10 : i32, message = "bqd,bkd->bqk"}> : () -> ()
    %cst_16 = arith.constant dense<0.000000e+00> : vector<1x8x8xf32>
    %55 = tpu.matmul %50, %52, %cst_16 {dimension_numbers = #tpu.dot_dimension_numbers<[2], [2], [1], [1], [0, 0, 0, 1, 1, 1], [0], [0]>} : vector<1x8x8xbf16>, vector<1x8x8xbf16>, vector<1x8x8xf32> -> vector<1x8x8xf32>
    "tpu.trace_stop"() : () -> ()
    %cst_17 = arith.constant dense<0xFF800000> : vector<1x8xf32>
    %56 = vector.multi_reduction <maximumf>, %55, %cst_17 [2] : vector<1x8x8xf32> to vector<1x8xf32>
    %57 = vector.shape_cast %56 : vector<1x8xf32> to vector<1x8x1xf32>
    %58 = vector.broadcast %57 : vector<1x8x1xf32> to vector<1x8x8xf32>
    %59 = arith.subf %55, %58 : vector<1x8x8xf32>
    %60 = math.exp %59 : vector<1x8x8xf32>
    %cst_18 = arith.constant dense<0.000000e+00> : vector<1x8xf32>
    %61 = vector.multi_reduction <add>, %60, %cst_18 [2] : vector<1x8x8xf32> to vector<1x8xf32>
    %62 = vector.shape_cast %61 : vector<1x8xf32> to vector<1x8x1xf32>
    %63 = arith.truncf %60 : vector<1x8x8xf32> to vector<1x8x8xbf16>
    "tpu.trace_start"() <{level = 10 : i32, message = "bqk,bkd->bqd"}> : () -> ()
    %cst_19 = arith.constant dense<0.000000e+00> : vector<1x8x8xf32>
    %64 = tpu.matmul %63, %54, %cst_19 {dimension_numbers = #tpu.dot_dimension_numbers<[2], [1], [1], [2], [0, 0, 0, 1, 1, 2], [0], [0]>} : vector<1x8x8xbf16>, vector<1x8x8xbf16>, vector<1x8x8xf32> -> vector<1x8x8xf32>
    "tpu.trace_stop"() : () -> ()
    %65 = tpu.reciprocal %62 {approx = true} : vector<1x8x1xf32> -> vector<1x8x1xf32>
    %66 = vector.broadcast %65 : vector<1x8x1xf32> to vector<1x8x8xf32>
    %67 = arith.mulf %64, %66 : vector<1x8x8xf32>
    %68 = vector.shape_cast %67 : vector<1x8x8xf32> to vector<8x8xf32>
    %c0_20 = arith.constant 0 : index
    %c16 = arith.constant 16 : index
    %69 = vector.load %arg7[%c0_20, %c16] : memref<8x32xf32, #tpu.memory_space<vmem>>, vector<8x8xf32>
    tpu.vector_store %arg7[%c0_20, %c16], %68 {strides = array<i32>} : memref<8x32xf32, #tpu.memory_space<vmem>>, vector<8x8xf32>,
    %70 = vector.extract_strided_slice %6 {offsets = [0, 24], sizes = [8, 8], strides = [1, 1]} : vector<8x96xbf16> to vector<8x8xbf16>
    %71 = vector.shape_cast %70 : vector<8x8xbf16> to vector<1x8x8xbf16>
    %72 = vector.extract_strided_slice %6 {offsets = [0, 56], sizes = [8, 8], strides = [1, 1]} : vector<8x96xbf16> to vector<8x8xbf16>
    %73 = vector.shape_cast %72 : vector<8x8xbf16> to vector<1x8x8xbf16>
    %74 = vector.extract_strided_slice %6 {offsets = [0, 88], sizes = [8, 8], strides = [1, 1]} : vector<8x96xbf16> to vector<8x8xbf16>
    %75 = vector.shape_cast %74 : vector<8x8xbf16> to vector<1x8x8xbf16>
    "tpu.trace_start"() <{level = 10 : i32, message = "bqd,bkd->bqk"}> : () -> ()
    %cst_21 = arith.constant dense<0.000000e+00> : vector<1x8x8xf32>
    %76 = tpu.matmul %71, %73, %cst_21 {dimension_numbers = #tpu.dot_dimension_numbers<[2], [2], [1], [1], [0, 0, 0, 1, 1, 1], [0], [0]>} : vector<1x8x8xbf16>, vector<1x8x8xbf16>, vector<1x8x8xf32> -> vector<1x8x8xf32>
    "tpu.trace_stop"() : () -> ()
    %cst_22 = arith.constant dense<0xFF800000> : vector<1x8xf32>
    %77 = vector.multi_reduction <maximumf>, %76, %cst_22 [2] : vector<1x8x8xf32> to vector<1x8xf32>
    %78 = vector.shape_cast %77 : vector<1x8xf32> to vector<1x8x1xf32>
    %79 = vector.broadcast %78 : vector<1x8x1xf32> to vector<1x8x8xf32>
    %80 = arith.subf %76, %79 : vector<1x8x8xf32>
    %81 = math.exp %80 : vector<1x8x8xf32>
    %cst_23 = arith.constant dense<0.000000e+00> : vector<1x8xf32>
    %82 = vector.multi_reduction <add>, %81, %cst_23 [2] : vector<1x8x8xf32> to vector<1x8xf32>
    %83 = vector.shape_cast %82 : vector<1x8xf32> to vector<1x8x1xf32>
    %84 = arith.truncf %81 : vector<1x8x8xf32> to vector<1x8x8xbf16>
    "tpu.trace_start"() <{level = 10 : i32, message = "bqk,bkd->bqd"}> : () -> ()
    %cst_24 = arith.constant dense<0.000000e+00> : vector<1x8x8xf32>
    %85 = tpu.matmul %84, %75, %cst_24 {dimension_numbers = #tpu.dot_dimension_numbers<[2], [1], [1], [2], [0, 0, 0, 1, 1, 2], [0], [0]>} : vector<1x8x8xbf16>, vector<1x8x8xbf16>, vector<1x8x8xf32> -> vector<1x8x8xf32>
    "tpu.trace_stop"() : () -> ()
    %86 = tpu.reciprocal %83 {approx = true} : vector<1x8x1xf32> -> vector<1x8x1xf32>
    %87 = vector.broadcast %86 : vector<1x8x1xf32> to vector<1x8x8xf32>
    %88 = arith.mulf %85, %87 : vector<1x8x8xf32>
    %89 = vector.shape_cast %88 : vector<1x8x8xf32> to vector<8x8xf32>
    %c0_25 = arith.constant 0 : index
    %c24 = arith.constant 24 : index
    %90 = vector.load %arg7[%c0_25, %c24] : memref<8x32xf32, #tpu.memory_space<vmem>>, vector<8x8xf32>
    tpu.vector_store %arg7[%c0_25, %c24], %89 {strides = array<i32>} : memref<8x32xf32, #tpu.memory_space<vmem>>, vector<8x8xf32>,
    %c0_26 = arith.constant 0 : index
    %c0_27 = arith.constant 0 : index
    %91 = vector.load %arg7[%c0_26, %c0_27] : memref<8x32xf32, #tpu.memory_space<vmem>>, vector<8x32xf32>
    %92 = arith.truncf %91 : vector<8x32xf32> to vector<8x32xbf16>
    %c0_28 = arith.constant 0 : index
    %c0_29 = arith.constant 0 : index
    %93 = vector.load %arg4[%c0_28, %c0_29] : memref<32x32xbf16, #tpu.memory_space<vmem>>, vector<32x32xbf16>
    %cst_30 = arith.constant dense<0.000000e+00> : vector<8x32xf32>
    %94 = tpu.matmul %92, %93, %cst_30 {dimension_numbers = #tpu.dot_dimension_numbers<[1], [0], [0], [1], [0, 0, 1, 1], [], []>} : vector<8x32xbf16>, vector<32x32xbf16>, vector<8x32xf32> -> vector<8x32xf32>
    %c0_31 = arith.constant 0 : index
    %c0_32 = arith.constant 0 : index
    %95 = vector.load %arg5[%c0_31, %c0_32] : memref<1x32xf32, #tpu.memory_space<vmem>>, vector<1x32xf32>
    %96 = vector.broadcast %95 : vector<1x32xf32> to vector<8x32xf32>
    %97 = arith.addf %94, %96 : vector<8x32xf32>
    %c0_33 = arith.constant 0 : index
    %c0_34 = arith.constant 0 : index
    %98 = vector.load %arg6[%c0_33, %c0_34] : memref<8x32xf32, #tpu.memory_space<vmem>>, vector<8x32xf32>
    tpu.vector_store %arg6[%c0_33, %c0_34], %97 {strides = array<i32>} : memref<8x32xf32, #tpu.memory_space<vmem>>, vector<8x32xf32>,
    return
  }
  func.func @transform_0(%arg0: i32) -> (i32, i32) {
    %c0_i32 = arith.constant 0 : i32
    %c0_i32_0 = arith.constant 0 : i32
    return %arg0, %c0_i32 : i32, i32
  }
  func.func @transform_1(%arg0: i32) -> (i32, i32) {
    %c0_i32 = arith.constant 0 : i32
    %c0_i32_0 = arith.constant 0 : i32
    %c0_i32_1 = arith.constant 0 : i32
    return %c0_i32, %c0_i32_0 : i32, i32
  }
  func.func @transform_2(%arg0: i32) -> (i32, i32) {
    %c0_i32 = arith.constant 0 : i32
    %c0_i32_0 = arith.constant 0 : i32
    %c0_i32_1 = arith.constant 0 : i32
    return %c0_i32, %c0_i32_0 : i32, i32
  }
  func.func @transform_3(%arg0: i32) -> (i32, i32) {
    %c0_i32 = arith.constant 0 : i32
    %c0_i32_0 = arith.constant 0 : i32
    %c0_i32_1 = arith.constant 0 : i32
    return %c0_i32, %c0_i32_0 : i32, i32
  }
  func.func @transform_4(%arg0: i32) -> (i32, i32) {
    %c0_i32 = arith.constant 0 : i32
    %c0_i32_0 = arith.constant 0 : i32
    %c0_i32_1 = arith.constant 0 : i32
    return %c0_i32, %c0_i32_0 : i32, i32
  }
  func.func @transform_5(%arg0: i32) -> (i32, i32) {
    %c0_i32 = arith.constant 0 : i32
    %c0_i32_0 = arith.constant 0 : i32
    return %arg0, %c0_i32 : i32, i32
  }
}

</mosaic_0001>

<llo_original>
// kernel: tpu_custom_call.1
$region0: #{tpu_custom_call.1}
  #allocation0 [shape = 'u32[]', space=smem, size = 0x4, offset = 0x4, fixed_abs, tag = 'smem constant byte address 0x4 - core index']
  #allocation1 [shape = 'u32[144,128]{1,0:T(1,128)}', space=vmem, size = 0x12000, scoped, tag = 'internal scratch']
  #allocation2 [shape = 'f32[8,32]{1,0:T(8,128)}', space=vmem, size = 0x1000, scoped, tag = 'scratch operand']
  %s0 = inlined_call_operand.hbm [shape: bf16[16,32], index: 0, kind: input, shape index: {}]
  %s1 = inlined_call_operand.hbm [shape: bf16[32,96], index: 1, kind: input, shape index: {}]
  %s2 = inlined_call_operand.vmem [shape: f32[1,96], index: 2, kind: input, shape index: {}]
  %s3 = inlined_call_operand.hbm [shape: bf16[32,32], index: 3, kind: input, shape index: {}]
  %s4 = inlined_call_operand.vmem [shape: f32[1,32], index: 4, kind: input, shape index: {}]
  %s5 = inlined_call_operand.hbm [shape: f32[16,32], index: 5, kind: output, shape index: {}]
  %s6 = sld [smem:[#allocation0]]
  $region65: #{tpu_custom_call.1} parent=0
    _
  %s8 = ssub.s32 1, %s6
  %s9 = scalar_select 0, %s8, %s6
  $region1: #{tpu_custom_call.1} parent=0
    #allocation3 [shape = 'u8[4096]{0}', space=vmem, size = 0x1000, scoped, tag = 'input window, operand 0']
    #allocation4 [shape = 's32[2]{0}', space=sflag, size = 0x8, scoped, tag = 'scoped memory for tpu_custom_call.1']
    #allocation5 [shape = 's32[2]{0}', space=sflag, size = 0x8, scoped, tag = 'scoped memory for tpu_custom_call.1']
    #allocation6 [shape = 'u8[8192]{0}', space=vmem, size = 0x2000, scoped, tag = 'input window, operand 1, single buffered']
    #allocation7 [shape = 's32[1]{0}', space=sflag, size = 0x4, scoped, tag = 'scoped memory for tpu_custom_call.1']
    #allocation8 [shape = 'u8[8192]{0}', space=vmem, size = 0x2000, scoped, tag = 'input window, operand 3, single buffered']
    #allocation9 [shape = 'u8[8192]{0}', space=vmem, size = 0x2000, scoped, tag = 'output window, operand 0']
    %10 = vsyncpa [#allocation4], 0
    %s11 = scalar_lea.sflag [#allocation4], 1
    %12 = vsyncpa %s11, 0
    %13 = vsyncpa [#allocation7], 0
    %14 = vsyncpa [#allocation5], 0
    %s15 = scalar_lea.sflag [#allocation5], 1
    %16 = vsyncpa %s15, 0
    loop: start=0, step=1, limit=4
    $region2: #{tpu_custom_call.1} parent=1 // loop_pre_header
      _
    $region3: #{tpu_custom_call.1} parent=1 // loop_header
      %s18 = sphi 0, %s22
      %p19 = scmp.ge.s32.totalorder %s18, 4
      %s28 = sphi 0, %s30
      %s31 = sphi 0, %s28
      %s32 = sphi 0, %s31
      %s48 = sphi 0, %s32
      %s52 = sphi 0, %s52
      %s54 = sphi 0, %s52
      %s55 = sphi 0, %s54
      %s69 = sphi 0, %s55
      %s73 = sphi 0, %s73
      %s75 = sphi 0, %s73
      %s76 = sphi 0, %s75
      %s90 = sphi 0, %s76
      %s94 = sphi 0, %s94
      %s96 = sphi 0, %s94
      %s97 = sphi 0, %s96
      %s111 = sphi 0, %s97
      %s115 = sphi 0, %s115
      %s117 = sphi 0, %s115
      %s118 = sphi 0, %s117
      %s132 = sphi 0, %s118
      %s138 = sphi 0, %s140
      %s141 = sphi 0, %s138
      %s142 = sphi 0, %s141
      %s158 = sphi 0, %s142
    $region4: #{tpu_custom_call.1} parent=1 // loop_header_branch
      %21 = sbr.rel (%p19) target = $region8
    $region5: #{tpu_custom_call.1} parent=1 // loop_body
      %s23 = ssub.s32 %s18, 1
      %s24 = ssub.s32 %s18, 2
      %s25 = sadd.s32 %s18, 1
      %s26 = ssub.s32 %s18, %s25
      %p27 = scmp.eq.s32.totalorder %s26, 0
      %s29 = sadd.s32 %s28, 1
      %s30 = scalar_select %p27, %s28, %s29
      %p33 = pneg %p27
      %p34 = scmp.eq.s32.totalorder %s18, 1
      %p35 = por %p33, %p34
      %p36 = scmp.ne.s32.totalorder %s28, %s31
      %p37 = scmp.eq.s32.totalorder %s18, 0
      %p38 = por %p36, %p37
      %p39 = scmp.ne.s32.totalorder %s28, %s31
      %p40 = scmp.eq.s32.totalorder %s23, 1
      %p41 = por %p39, %p40
      %p42 = scmp.ne.s32.totalorder %s31, %s32
      %p43 = scmp.eq.s32.totalorder %s23, 0
      %p44 = por %p42, %p43
      %p45 = scmp.ne.s32.totalorder %s31, %s32
      %p46 = scmp.eq.s32.totalorder %s24, 1
      %p47 = por %p45, %p46
      %p49 = scmp.ne.s32.totalorder %s32, %s48
      %p50 = scmp.eq.s32.totalorder %s24, 0
      %p51 = por %p49, %p50
      %s53 = sadd.s32 %s52, 1
      %p56 = scmp.eq.s32.totalorder %s18, 1
      %p57 = scmp.ne.s32.totalorder %s52, %s54
      %p58 = scmp.eq.s32.totalorder %s18, 0
      %p59 = por %p57, %p58
      %p60 = scmp.ne.s32.totalorder %s52, %s54
      %p61 = scmp.eq.s32.totalorder %s23, 1
      %p62 = por %p60, %p61
      %p63 = scmp.ne.s32.totalorder %s54, %s55
      %p64 = scmp.eq.s32.totalorder %s23, 0
      %p65 = por %p63, %p64
      %p66 = scmp.ne.s32.totalorder %s54, %s55
      %p67 = scmp.eq.s32.totalorder %s24, 1
      %p68 = por %p66, %p67
      %p70 = scmp.ne.s32.totalorder %s55, %s69
      %p71 = scmp.eq.s32.totalorder %s24, 0
      %p72 = por %p70, %p71
      %s74 = sadd.s32 %s73, 1
      %p77 = scmp.eq.s32.totalorder %s18, 1
      %p78 = scmp.ne.s32.totalorder %s73, %s75
      %p79 = scmp.eq.s32.totalorder %s18, 0
      %p80 = por %p78, %p79
      %p81 = scmp.ne.s32.totalorder %s73, %s75
      %p82 = scmp.eq.s32.totalorder %s23, 1
      %p83 = por %p81, %p82
      %p84 = scmp.ne.s32.totalorder %s75, %s76
      %p85 = scmp.eq.s32.totalorder %s23, 0
      %p86 = por %p84, %p85
      %p87 = scmp.ne.s32.totalorder %s75, %s76
      %p88 = scmp.eq.s32.totalorder %s24, 1
      %p89 = por %p87, %p88
      %p91 = scmp.ne.s32.totalorder %s76, %s90
      %p92 = scmp.eq.s32.totalorder %s24, 0
      %p93 = por %p91, %p92
      %s95 = sadd.s32 %s94, 1
      %p98 = scmp.eq.s32.totalorder %s18, 1
      %p99 = scmp.ne.s32.totalorder %s94, %s96
      %p100 = scmp.eq.s32.totalorder %s18, 0
      %p101 = por %p99, %p100
      %p102 = scmp.ne.s32.totalorder %s94, %s96
      %p103 = scmp.eq.s32.totalorder %s23, 1
      %p104 = por %p102, %p103
      %p105 = scmp.ne.s32.totalorder %s96, %s97
      %p106 = scmp.eq.s32.totalorder %s23, 0
      %p107 = por %p105, %p106
      %p108 = scmp.ne.s32.totalorder %s96, %s97
      %p109 = scmp.eq.s32.totalorder %s24, 1
      %p110 = por %p108, %p109
      %p112 = scmp.ne.s32.totalorder %s97, %s111
      %p113 = scmp.eq.s32.totalorder %s24, 0
      %p114 = por %p112, %p113
      %s116 = sadd.s32 %s115, 1
      %p119 = scmp.eq.s32.totalorder %s18, 1
      %p120 = scmp.ne.s32.totalorder %s115, %s117
      %p121 = scmp.eq.s32.totalorder %s18, 0
      %p122 = por %p120, %p121
      %p123 = scmp.ne.s32.totalorder %s115, %s117
      %p124 = scmp.eq.s32.totalorder %s23, 1
      %p125 = por %p123, %p124
      %p126 = scmp.ne.s32.totalorder %s117, %s118
      %p127 = scmp.eq.s32.totalorder %s23, 0
      %p128 = por %p126, %p127
      %p129 = scmp.ne.s32.totalorder %s117, %s118
      %p130 = scmp.eq.s32.totalorder %s24, 1
      %p131 = por %p129, %p130
      %p133 = scmp.ne.s32.totalorder %s118, %s132
      %p134 = scmp.eq.s32.totalorder %s24, 0
      %p135 = por %p133, %p134
      %s136 = ssub.s32 %s18, %s25
      %p137 = scmp.eq.s32.totalorder %s136, 0
      %s139 = sadd.s32 %s138, 1
      %s140 = scalar_select %p137, %s138, %s139
      %p143 = pneg %p137
      %p144 = scmp.eq.s32.totalorder %s18, 1
      %p145 = por %p143, %p144
      %p146 = scmp.ne.s32.totalorder %s138, %s141
      %p147 = scmp.eq.s32.totalorder %s18, 0
      %p148 = por %p146, %p147
      %p149 = scmp.ne.s32.totalorder %s138, %s141
      %p150 = scmp.eq.s32.totalorder %s23, 1
      %p151 = por %p149, %p150
      %p152 = scmp.ne.s32.totalorder %s141, %s142
      %p153 = scmp.eq.s32.totalorder %s23, 0
      %p154 = por %p152, %p153
      %p155 = scmp.ne.s32.totalorder %s141, %s142
      %p156 = scmp.eq.s32.totalorder %s24, 1
      %p157 = por %p155, %p156
      %p159 = scmp.ne.s32.totalorder %s142, %s158
      %p160 = scmp.eq.s32.totalorder %s24, 0
      %p161 = por %p159, %p160
      %p162 = scmp.le.s32.totalorder 1, %s18
      %p163 = scmp.lt.s32.totalorder %s18, 3
      %p164 = pnand %p162, %p163
      %p165 = pneg %p164
      // Predicated region
      $region9: #{tpu_custom_call.1} parent=5 // pred_check
        _
      $region10: #{tpu_custom_call.1} parent=5 // pred_check_branch
        %167 = sbr.rel (%p164) target = $region12
      $region11: #{tpu_custom_call.1} parent=5 // pred_region
        %s168 = ssub.s32 %s18, 1
        // Predicated region
        $region13: #{tpu_custom_call.1} parent=11 // pred_check
          %p169 = pneg %p65
        $region14: #{tpu_custom_call.1} parent=11 // pred_check_branch
          %171 = sbr.rel (%p169) target = $region16
        $region15: #{tpu_custom_call.1} parent=11 // pred_region
          %s173 = ssub.s32 256, 256
          %174 = vsyncadd [#allocation7], %s173
          %s175 = sshll.u32 [#allocation6], 4
          %s176 = int_to_ptr.vmem [resolvable:$true] %s175
          %181 = dma.hbm_to_vmem [thread:$0]  %s1, 256, %s176, [#allocation7], 64, 64, 4
        $region16: #{tpu_custom_call.1} parent=11 // pred_fallthru
          _
        // Predicated region
        $region17: #{tpu_custom_call.1} parent=11 // pred_check
          %p182 = pneg %p86
        $region18: #{tpu_custom_call.1} parent=11 // pred_check_branch
          %184 = sbr.rel (%p182) target = $region20
        $region19: #{tpu_custom_call.1} parent=11 // pred_region
          _
        $region20: #{tpu_custom_call.1} parent=11 // pred_fallthru
          _
        // Predicated region
        $region21: #{tpu_custom_call.1} parent=11 // pred_check
          %p185 = pneg %p107
        $region22: #{tpu_custom_call.1} parent=11 // pred_check_branch
          %187 = sbr.rel (%p185) target = $region24
        $region23: #{tpu_custom_call.1} parent=11 // pred_region
          %s189 = ssub.s32 256, 256
          %190 = vsyncadd [#allocation7], %s189
          %s191 = sshll.u32 [#allocation8], 4
          %s192 = int_to_ptr.vmem [resolvable:$true] %s191
          %197 = dma.hbm_to_vmem [thread:$0]  %s3, 256, %s192, [#allocation7], 64, 64, 4
        $region24: #{tpu_custom_call.1} parent=11 // pred_fallthru
          _
        // Predicated region
        $region25: #{tpu_custom_call.1} parent=11 // pred_check
          %p198 = pneg %p128
        $region26: #{tpu_custom_call.1} parent=11 // pred_check_branch
          %200 = sbr.rel (%p198) target = $region28
        $region27: #{tpu_custom_call.1} parent=11 // pred_region
          _
        $region28: #{tpu_custom_call.1} parent=11 // pred_fallthru
          _
      $region12: #{tpu_custom_call.1} parent=5 // pred_fallthru
        _
      %p201 = scmp.lt.s32.totalorder %s18, 2
      // Predicated region
      $region29: #{tpu_custom_call.1} parent=5 // pred_check
        %p202 = pneg %p201
      $region30: #{tpu_custom_call.1} parent=5 // pred_check_branch
        %204 = sbr.rel (%p202) target = $region32
      $region31: #{tpu_custom_call.1} parent=5 // pred_region
        // Predicated region
        $region33: #{tpu_custom_call.1} parent=31 // pred_check
          %p205 = pneg %p38
        $region34: #{tpu_custom_call.1} parent=31 // pred_check_branch
          %207 = sbr.rel (%p205) target = $region36
        $region35: #{tpu_custom_call.1} parent=31 // pred_region
          %s208 = sand.u32 %s28, 1
          %s209 = scalar_lea.sflag [#allocation4], %s208
          %s210 = sand.u32 %s28, 1
          %s211 = smul.addr %s210, 4
          %s212 = scalar_lea.vmem [#allocation3], %s211
          %s214 = ssub.s32 64, 64
          %215 = vsyncadd %s209, %s214
          %s216 = smul.addr %s18, 64
          %s217 = scalar_lea.hbm %s0, %s216
          %s219 = sshll.u32 %s212, 4
          %s220 = int_to_ptr.vmem [resolvable:$true] %s219
          %222 = dma.hbm_to_vmem [thread:$0]  %s217, 64, %s220, %s209
        $region36: #{tpu_custom_call.1} parent=31 // pred_fallthru
          _
      $region32: #{tpu_custom_call.1} parent=5 // pred_fallthru
        _
      %p223 = scmp.le.s32.totalorder 1, %s18
      %p224 = scmp.lt.s32.totalorder %s18, 3
      %p225 = pnand %p223, %p224
      %p226 = pneg %p225
      // Predicated region
      $region37: #{tpu_custom_call.1} parent=5 // pred_check
        _
      $region38: #{tpu_custom_call.1} parent=5 // pred_check_branch
        %228 = sbr.rel (%p225) target = $region40
      $region39: #{tpu_custom_call.1} parent=5 // pred_region
        %s229 = ssub.s32 %s18, 1
        %s230 = sand.u32 %s31, 1
        %s231 = scalar_lea.sflag [#allocation4], %s230
        %s232 = sand.u32 %s31, 1
        %s233 = smul.addr %s232, 4
        %s234 = scalar_lea.vmem [#allocation3], %s233
        // Predicated region
        $region41: #{tpu_custom_call.1} parent=39 // pred_check
          %p235 = pneg %p44
        $region42: #{tpu_custom_call.1} parent=39 // pred_check_branch
          %237 = sbr.rel (%p235) target = $region44
        $region43: #{tpu_custom_call.1} parent=39 // pred_region
          %238 = dma.done %s231, 64
        $region44: #{tpu_custom_call.1} parent=39 // pred_fallthru
          _
        // Predicated region
        $region45: #{tpu_custom_call.1} parent=39 // pred_check
          %p239 = pneg %p65
        $region46: #{tpu_custom_call.1} parent=39 // pred_check_branch
          %241 = sbr.rel (%p239) target = $region48
        $region47: #{tpu_custom_call.1} parent=39 // pred_region
          %242 = dma.done [#allocation7], 256
        $region48: #{tpu_custom_call.1} parent=39 // pred_fallthru
          _
        // Predicated region
        $region49: #{tpu_custom_call.1} parent=39 // pred_check
          %p243 = pneg %p107
        $region50: #{tpu_custom_call.1} parent=39 // pred_check_branch
          %245 = sbr.rel (%p243) target = $region52
        $region51: #{tpu_custom_call.1} parent=39 // pred_region
          %246 = dma.done [#allocation7], 256
        $region52: #{tpu_custom_call.1} parent=39 // pred_fallthru
          _
        %s247 = sand.u32 %s31, 1
        %s248 = scalar_lea.sflag [#allocation4], %s247
        %s249 = sand.u32 %s31, 1
        %s250 = smul.addr %s249, 4
        %s251 = scalar_lea.vmem [#allocation3], %s250
        %p252 = pneg %p44
        %p253 = pneg %p41
        %p254 = pneg %p65
        %p255 = pneg %p62
        %p256 = pneg %p86
        %p257 = pneg %p83
        %p258 = pneg %p107
        %p259 = pneg %p104
        %p260 = pneg %p128
        %p261 = pneg %p125
        %p262 = pneg %p154
        %p263 = pneg %p151
        %s264 = sand.u32 %s141, 1
        %s265 = scalar_lea.sflag [#allocation5], %s264
        %s266 = sand.u32 %s141, 1
        %s267 = smul.addr %s266, 8
        %s268 = scalar_lea.vmem [#allocation9], %s267
        %v270 = vld [vmem:[%s234] sm:$0xf]
        %v271 = vld [vmem:[#allocation6] sm:$0xf]
        %v272 = vld [vmem:[#allocation6 + $0x4] sm:$0xf]
        %v273 = vld [vmem:[#allocation6 + $0x8] sm:$0xf]
        %v274 = vld [vmem:[#allocation6 + $0xc] sm:$0xf]
        %v275 = vld [vmem:[%s2] sm:$0x1]
        %v277 = vlaneseq
        %v278 = vshrl.u32 %v277, 7
        %v279 = vsub.s32 0, %v278
        %v280 = vrot.slane %v275, %v279
        %v286 = vunpack.c.l.b16 %v271
        %v287 = vunpack.c.l.b16 %v272
        %v288 = vunpack.c.l.b16 %v273
        %v289 = vunpack.c.l.b16 %v274
        %v290 = vpack.c.b16 %v287, %v286
        %v291 = vpack.c.b16 %v289, %v288
        %vm294 = vcmask 261120
        %v296 = vsel %vm294, %v270, 0
        %298 = vmatprep.subr.bf16.mxu0 0
        %299 = vmatpush1.bf16.msra.mxu0 %v290
        %300 = vmatprep.subr.bf16.mxu0 0
        %301 = vmatpush1.bf16.msra.mxu0 %v291
        %302 = vmatprep.subr.bf16.mxu0 0
        %303 = vmatpush1.bf16.msra.mxu0 0
        %304 = vmatprep.subr.bf16.mxu0 0
        %305 = vmatpush1.bf16.msra.mxu0 0
        %306 = vmatprep.subr.bf16.mxu0 0
        %307 = vmatpush1.bf16.msra.mxu0 0
        %308 = vmatprep.subr.bf16.mxu0 0
        %309 = vmatpush1.bf16.msra.mxu0 0
        %310 = vmatprep.subr.bf16.mxu0 0
        %311 = vmatpush1.bf16.msra.mxu0 0
        %312 = vmatprep.subr.bf16.mxu0 0
        %313 = vmatpush1.bf16.msra.mxu0 0
        %314 = vmatprep.subr.bf16.mxu0 0
        %315 = vmatpush1.bf16.msra.mxu0 0
        %316 = vmatprep.subr.bf16.mxu0 0
        %317 = vmatpush1.bf16.msra.mxu0 0
        %318 = vmatprep.subr.bf16.mxu0 0
        %319 = vmatpush1.bf16.msra.mxu0 0
        %320 = vmatprep.subr.bf16.mxu0 0
        %321 = vmatpush1.bf16.msra.mxu0 0
        %322 = vmatprep.subr.bf16.mxu0 0
        %323 = vmatpush1.bf16.msra.mxu0 0
        %324 = vmatprep.subr.bf16.mxu0 0
        %325 = vmatpush1.bf16.msra.mxu0 0
        %326 = vmatprep.subr.bf16.mxu0 0
        %327 = vmatpush1.bf16.msra.mxu0 0
        %328 = vmatprep.subr.bf16.mxu0 0
        %329 = vmatpush1.bf16.msra.mxu0 0
        %330 = vmatprep.mubr.bf16.mxu0 0
        %331 = vmatmul.mubr.bf16.gmra.mrb[0].mxu0 %v296
        %v332 = vpop.f32.mrb[0].mxu0
        %v333 = vadd.f32 %v280, %v332
        %v334 = vpop.f32.mrb[0].mxu0
        %v335 = vpop.f32.mrb[0].mxu0
        %v336 = vpop.f32.mrb[0].mxu0
        %337 = vdwg.mxu0
        %v338 = vpack.c.bf16 %v333, %v333
        %340 = vrot.lane.b32.xlu0 %v338, 96
        %v341 = vpop.permute.xlu0 %340
        %vm342 = vcmask 64512
        %v344 = vsel %vm342, %v338, 0
        %v347 = vsel %vm342, %v341, 0
        %349 = vmatprep.subr.bf16.mxu0 0
        %350 = vmatpush1.bf16.xpose.msra.mxu0 %v347
        %351 = vmatprep.subr.bf16.mxu0 0
        %352 = vmatpush1.bf16.xpose.msra.mxu0 0
        %353 = vmatprep.subr.bf16.mxu0 0
        %354 = vmatpush1.bf16.xpose.msra.mxu0 0
        %355 = vmatprep.subr.bf16.mxu0 0
        %356 = vmatpush1.bf16.xpose.msra.mxu0 0
        %357 = vmatprep.subr.bf16.mxu0 0
        %358 = vmatpush1.bf16.xpose.msra.mxu0 0
        %359 = vmatprep.subr.bf16.mxu0 0
        %360 = vmatpush1.bf16.xpose.msra.mxu0 0
        %361 = vmatprep.subr.bf16.mxu0 0
        %362 = vmatpush1.bf16.xpose.msra.mxu0 0
        %363 = vmatprep.subr.bf16.mxu0 0
        %364 = vmatpush1.bf16.xpose.msra.mxu0 0
        %365 = vmatprep.subr.bf16.mxu0 0
        %366 = vmatpush1.bf16.xpose.msra.mxu0 0
        %367 = vmatprep.subr.bf16.mxu0 0
        %368 = vmatpush1.bf16.xpose.msra.mxu0 0
        %369 = vmatprep.subr.bf16.mxu0 0
        %370 = vmatpush1.bf16.xpose.msra.mxu0 0
        %371 = vmatprep.subr.bf16.mxu0 0
        %372 = vmatpush1.bf16.xpose.msra.mxu0 0
        %373 = vmatprep.subr.bf16.mxu0 0
        %374 = vmatpush1.bf16.xpose.msra.mxu0 0
        %375 = vmatprep.subr.bf16.mxu0 0
        %376 = vmatpush1.bf16.xpose.msra.mxu0 0
        %377 = vmatprep.subr.bf16.mxu0 0
        %378 = vmatpush1.bf16.xpose.msra.mxu0 0
        %379 = vmatprep.subr.bf16.mxu0 0
        %380 = vmatpush1.bf16.xpose.msra.mxu0 0
        %381 = vmatprep.mubr.bf16.mxu0 0
        %382 = vmatmul.mubr.bf16.gmra.mrb[0].mxu0 %v344
        %v383 = vpop.f32.mrb[0].mxu0
        %v384 = vadd.f32 0.0, %v383
        %v385 = vpop.f32.mrb[0].mxu0
        %v386 = vpop.f32.mrb[0].mxu0
        %v387 = vpop.f32.mrb[0].mxu0
        %388 = vdwg.mxu0
        %v389 = vsel %vm342, %v384, -inf
        %390 = vmax.xlane.f32.xlu0 %v389
        %v391 = vpop.xlane.xlu0 %390
        %v392 = vsub.f32 %v384, %v391
        %v393 = vmul.f32 %v392, 1.442695
        %v394 = vpow.pop %v393
        %v395 = vsel %vm342, %v394, 0.0
        %396 = vadd.xlane.f32.xlu0 %v395
        %v397 = vpop.xlane.xlu0 %396
        %v398 = vpack.c.bf16 %v394, %v394
        %399 = vrot.lane.b32.xlu0 %v338, 64
        %v400 = vpop.permute.xlu0 %399
        %v402 = vsel %vm342, %v398, 0
        %vm404 = vcmask 1043456
        %v406 = vsel %vm404, %v400, 0
        %408 = vmatprep.subr.bf16.mxu0 0
        %409 = vmatpush1.bf16.msra.mxu0 %v406
        %410 = vmatprep.subr.bf16.mxu0 0
        %411 = vmatpush1.bf16.msra.mxu0 0
        %412 = vmatprep.subr.bf16.mxu0 0
        %413 = vmatpush1.bf16.msra.mxu0 0
        %414 = vmatprep.subr.bf16.mxu0 0
        %415 = vmatpush1.bf16.msra.mxu0 0
        %416 = vmatprep.subr.bf16.mxu0 0
        %417 = vmatpush1.bf16.msra.mxu0 0
        %418 = vmatprep.subr.bf16.mxu0 0
        %419 = vmatpush1.bf16.msra.mxu0 0
        %420 = vmatprep.subr.bf16.mxu0 0
        %421 = vmatpush1.bf16.msra.mxu0 0
        %422 = vmatprep.subr.bf16.mxu0 0
        %423 = vmatpush1.bf16.msra.mxu0 0
        %424 = vmatprep.subr.bf16.mxu0 0
        %425 = vmatpush1.bf16.msra.mxu0 0
        %426 = vmatprep.subr.bf16.mxu0 0
        %427 = vmatpush1.bf16.msra.mxu0 0
        %428 = vmatprep.subr.bf16.mxu0 0
        %429 = vmatpush1.bf16.msra.mxu0 0
        %430 = vmatprep.subr.bf16.mxu0 0
        %431 = vmatpush1.bf16.msra.mxu0 0
        %432 = vmatprep.subr.bf16.mxu0 0
        %433 = vmatpush1.bf16.msra.mxu0 0
        %434 = vmatprep.subr.bf16.mxu0 0
        %435 = vmatpush1.bf16.msra.mxu0 0
        %436 = vmatprep.subr.bf16.mxu0 0
        %437 = vmatpush1.bf16.msra.mxu0 0
        %438 = vmatprep.subr.bf16.mxu0 0
        %439 = vmatpush1.bf16.msra.mxu0 0
        %440 = vmatprep.mubr.bf16.mxu0 0
        %441 = vmatmul.mubr.bf16.gmra.mrb[0].mxu0 %v402
        %v442 = vpop.f32.mrb[0].mxu0
        %v443 = vadd.f32 0.0, %v442
        %v444 = vpop.f32.mrb[0].mxu0
        %v445 = vpop.f32.mrb[0].mxu0
        %v446 = vpop.f32.mrb[0].mxu0
        %447 = vdwg.mxu0
        %v448 = vrcp.pop %v397
        %v449 = vmul.f32 %v443, %v448
        %450 = vst.msk [vmem:[#allocation2] sm:$0xff] %vm342, %v449
        %451 = vrot.lane.b32.xlu0 %v338, 120
        %v452 = vpop.permute.xlu0 %451
        %453 = vrot.lane.b32.xlu0 %v338, 88
        %v454 = vpop.permute.xlu0 %453
        %v456 = vsel %vm342, %v452, 0
        %v459 = vsel %vm342, %v454, 0
        %461 = vmatprep.subr.bf16.mxu0 0
        %462 = vmatpush1.bf16.xpose.msra.mxu0 %v459
        %463 = vmatprep.subr.bf16.mxu0 0
        %464 = vmatpush1.bf16.xpose.msra.mxu0 0
        %465 = vmatprep.subr.bf16.mxu0 0
        %466 = vmatpush1.bf16.xpose.msra.mxu0 0
        %467 = vmatprep.subr.bf16.mxu0 0
        %468 = vmatpush1.bf16.xpose.msra.mxu0 0
        %469 = vmatprep.subr.bf16.mxu0 0
        %470 = vmatpush1.bf16.xpose.msra.mxu0 0
        %471 = vmatprep.subr.bf16.mxu0 0
        %472 = vmatpush1.bf16.xpose.msra.mxu0 0
        %473 = vmatprep.subr.bf16.mxu0 0
        %474 = vmatpush1.bf16.xpose.msra.mxu0 0
        %475 = vmatprep.subr.bf16.mxu0 0
        %476 = vmatpush1.bf16.xpose.msra.mxu0 0
        %477 = vmatprep.subr.bf16.mxu0 0
        %478 = vmatpush1.bf16.xpose.msra.mxu0 0
        %479 = vmatprep.subr.bf16.mxu0 0
        %480 = vmatpush1.bf16.xpose.msra.mxu0 0
        %481 = vmatprep.subr.bf16.mxu0 0
        %482 = vmatpush1.bf16.xpose.msra.mxu0 0
        %483 = vmatprep.subr.bf16.mxu0 0
        %484 = vmatpush1.bf16.xpose.msra.mxu0 0
        %485 = vmatprep.subr.bf16.mxu0 0
        %486 = vmatpush1.bf16.xpose.msra.mxu0 0
        %487 = vmatprep.subr.bf16.mxu0 0
        %488 = vmatpush1.bf16.xpose.msra.mxu0 0
        %489 = vmatprep.subr.bf16.mxu0 0
        %490 = vmatpush1.bf16.xpose.msra.mxu0 0
        %491 = vmatprep.subr.bf16.mxu0 0
        %492 = vmatpush1.bf16.xpose.msra.mxu0 0
        %493 = vmatprep.mubr.bf16.mxu0 0
        %494 = vmatmul.mubr.bf16.gmra.mrb[0].mxu0 %v456
        %v495 = vpop.f32.mrb[0].mxu0
        %v496 = vadd.f32 0.0, %v495
        %v497 = vpop.f32.mrb[0].mxu0
        %v498 = vpop.f32.mrb[0].mxu0
        %v499 = vpop.f32.mrb[0].mxu0
        %500 = vdwg.mxu0
        %v501 = vsel %vm342, %v496, -inf
        %502 = vmax.xlane.f32.xlu0 %v501
        %v503 = vpop.xlane.xlu0 %502
        %v504 = vsub.f32 %v496, %v503
        %v505 = vmul.f32 %v504, 1.442695
        %v506 = vpow.pop %v505
        %v507 = vsel %vm342, %v506, 0.0
        %508 = vadd.xlane.f32.xlu0 %v507
        %v509 = vpop.xlane.xlu0 %508
        %v510 = vpack.c.bf16 %v506, %v506
        %511 = vrot.lane.b32.xlu0 %v338, 56
        %v512 = vpop.permute.xlu0 %511
        %v514 = vsel %vm342, %v510, 0
        %v517 = vsel %vm404, %v512, 0
        %519 = vmatprep.subr.bf16.mxu0 0
        %520 = vmatpush1.bf16.msra.mxu0 %v517
        %521 = vmatprep.subr.bf16.mxu0 0
        %522 = vmatpush1.bf16.msra.mxu0 0
        %523 = vmatprep.subr.bf16.mxu0 0
        %524 = vmatpush1.bf16.msra.mxu0 0
        %525 = vmatprep.subr.bf16.mxu0 0
        %526 = vmatpush1.bf16.msra.mxu0 0
        %527 = vmatprep.subr.bf16.mxu0 0
        %528 = vmatpush1.bf16.msra.mxu0 0
        %529 = vmatprep.subr.bf16.mxu0 0
        %530 = vmatpush1.bf16.msra.mxu0 0
        %531 = vmatprep.subr.bf16.mxu0 0
        %532 = vmatpush1.bf16.msra.mxu0 0
        %533 = vmatprep.subr.bf16.mxu0 0
        %534 = vmatpush1.bf16.msra.mxu0 0
        %535 = vmatprep.subr.bf16.mxu0 0
        %536 = vmatpush1.bf16.msra.mxu0 0
        %537 = vmatprep.subr.bf16.mxu0 0
        %538 = vmatpush1.bf16.msra.mxu0 0
        %539 = vmatprep.subr.bf16.mxu0 0
        %540 = vmatpush1.bf16.msra.mxu0 0
        %541 = vmatprep.subr.bf16.mxu0 0
        %542 = vmatpush1.bf16.msra.mxu0 0
        %543 = vmatprep.subr.bf16.mxu0 0
        %544 = vmatpush1.bf16.msra.mxu0 0
        %545 = vmatprep.subr.bf16.mxu0 0
        %546 = vmatpush1.bf16.msra.mxu0 0
        %547 = vmatprep.subr.bf16.mxu0 0
        %548 = vmatpush1.bf16.msra.mxu0 0
        %549 = vmatprep.subr.bf16.mxu0 0
        %550 = vmatpush1.bf16.msra.mxu0 0
        %551 = vmatprep.mubr.bf16.mxu0 0
        %552 = vmatmul.mubr.bf16.gmra.mrb[0].mxu0 %v514
        %v553 = vpop.f32.mrb[0].mxu0
        %v554 = vadd.f32 0.0, %v553
        %v555 = vpop.f32.mrb[0].mxu0
        %v556 = vpop.f32.mrb[0].mxu0
        %v557 = vpop.f32.mrb[0].mxu0
        %558 = vdwg.mxu0
        %v559 = vrcp.pop %v509
        %v560 = vmul.f32 %v554, %v559
        %562 = vrot.lane.b32.xlu0 %v560, 8
        %v563 = vpop.permute.xlu0 %562
        %vm565 = vcmask 130112
        %566 = vst.msk [vmem:[#allocation2] sm:$0xff] %vm565, %v563
        %567 = vrot.lane.b32.xlu0 %v338, 112
        %v568 = vpop.permute.xlu0 %567
        %569 = vrot.lane.b32.xlu0 %v338, 80
        %v570 = vpop.permute.xlu0 %569
        %v572 = vsel %vm342, %v568, 0
        %v575 = vsel %vm342, %v570, 0
        %577 = vmatprep.subr.bf16.mxu0 0
        %578 = vmatpush1.bf16.xpose.msra.mxu0 %v575
        %579 = vmatprep.subr.bf16.mxu0 0
        %580 = vmatpush1.bf16.xpose.msra.mxu0 0
        %581 = vmatprep.subr.bf16.mxu0 0
        %582 = vmatpush1.bf16.xpose.msra.mxu0 0
        %583 = vmatprep.subr.bf16.mxu0 0
        %584 = vmatpush1.bf16.xpose.msra.mxu0 0
        %585 = vmatprep.subr.bf16.mxu0 0
        %586 = vmatpush1.bf16.xpose.msra.mxu0 0
        %587 = vmatprep.subr.bf16.mxu0 0
        %588 = vmatpush1.bf16.xpose.msra.mxu0 0
        %589 = vmatprep.subr.bf16.mxu0 0
        %590 = vmatpush1.bf16.xpose.msra.mxu0 0
        %591 = vmatprep.subr.bf16.mxu0 0
        %592 = vmatpush1.bf16.xpose.msra.mxu0 0
        %593 = vmatprep.subr.bf16.mxu0 0
        %594 = vmatpush1.bf16.xpose.msra.mxu0 0
        %595 = vmatprep.subr.bf16.mxu0 0
        %596 = vmatpush1.bf16.xpose.msra.mxu0 0
        %597 = vmatprep.subr.bf16.mxu0 0
        %598 = vmatpush1.bf16.xpose.msra.mxu0 0
        %599 = vmatprep.subr.bf16.mxu0 0
        %600 = vmatpush1.bf16.xpose.msra.mxu0 0
        %601 = vmatprep.subr.bf16.mxu0 0
        %602 = vmatpush1.bf16.xpose.msra.mxu0 0
        %603 = vmatprep.subr.bf16.mxu0 0
        %604 = vmatpush1.bf16.xpose.msra.mxu0 0
        %605 = vmatprep.subr.bf16.mxu0 0
        %606 = vmatpush1.bf16.xpose.msra.mxu0 0
        %607 = vmatprep.subr.bf16.mxu0 0
        %608 = vmatpush1.bf16.xpose.msra.mxu0 0
        %609 = vmatprep.mubr.bf16.mxu0 0
        %610 = vmatmul.mubr.bf16.gmra.mrb[0].mxu0 %v572
        %v611 = vpop.f32.mrb[0].mxu0
        %v612 = vadd.f32 0.0, %v611
        %v613 = vpop.f32.mrb[0].mxu0
        %v614 = vpop.f32.mrb[0].mxu0
        %v615 = vpop.f32.mrb[0].mxu0
        %616 = vdwg.mxu0
        %v617 = vsel %vm342, %v612, -inf
        %618 = vmax.xlane.f32.xlu0 %v617
        %v619 = vpop.xlane.xlu0 %618
        %v620 = vsub.f32 %v612, %v619
        %v621 = vmul.f32 %v620, 1.442695
        %v622 = vpow.pop %v621
        %v623 = vsel %vm342, %v622, 0.0
        %624 = vadd.xlane.f32.xlu0 %v623
        %v625 = vpop.xlane.xlu0 %624
        %v626 = vpack.c.bf16 %v622, %v622
        %627 = vrot.lane.b32.xlu0 %v338, 48
        %v628 = vpop.permute.xlu0 %627
        %v630 = vsel %vm342, %v626, 0
        %v633 = vsel %vm404, %v628, 0
        %635 = vmatprep.subr.bf16.mxu0 0
        %636 = vmatpush1.bf16.msra.mxu0 %v633
        %637 = vmatprep.subr.bf16.mxu0 0
        %638 = vmatpush1.bf16.msra.mxu0 0
        %639 = vmatprep.subr.bf16.mxu0 0
        %640 = vmatpush1.bf16.msra.mxu0 0
        %641 = vmatprep.subr.bf16.mxu0 0
        %642 = vmatpush1.bf16.msra.mxu0 0
        %643 = vmatprep.subr.bf16.mxu0 0
        %644 = vmatpush1.bf16.msra.mxu0 0
        %645 = vmatprep.subr.bf16.mxu0 0
        %646 = vmatpush1.bf16.msra.mxu0 0
        %647 = vmatprep.subr.bf16.mxu0 0
        %648 = vmatpush1.bf16.msra.mxu0 0
        %649 = vmatprep.subr.bf16.mxu0 0
        %650 = vmatpush1.bf16.msra.mxu0 0
        %651 = vmatprep.subr.bf16.mxu0 0
        %652 = vmatpush1.bf16.msra.mxu0 0
        %653 = vmatprep.subr.bf16.mxu0 0
        %654 = vmatpush1.bf16.msra.mxu0 0
        %655 = vmatprep.subr.bf16.mxu0 0
        %656 = vmatpush1.bf16.msra.mxu0 0
        %657 = vmatprep.subr.bf16.mxu0 0
        %658 = vmatpush1.bf16.msra.mxu0 0
        %659 = vmatprep.subr.bf16.mxu0 0
        %660 = vmatpush1.bf16.msra.mxu0 0
        %661 = vmatprep.subr.bf16.mxu0 0
        %662 = vmatpush1.bf16.msra.mxu0 0
        %663 = vmatprep.subr.bf16.mxu0 0
        %664 = vmatpush1.bf16.msra.mxu0 0
        %665 = vmatprep.subr.bf16.mxu0 0
        %666 = vmatpush1.bf16.msra.mxu0 0
        %667 = vmatprep.mubr.bf16.mxu0 0
        %668 = vmatmul.mubr.bf16.gmra.mrb[0].mxu0 %v630
        %v669 = vpop.f32.mrb[0].mxu0
        %v670 = vadd.f32 0.0, %v669
        %v671 = vpop.f32.mrb[0].mxu0
        %v672 = vpop.f32.mrb[0].mxu0
        %v673 = vpop.f32.mrb[0].mxu0
        %674 = vdwg.mxu0
        %v675 = vrcp.pop %v625
        %v676 = vmul.f32 %v670, %v675
        %678 = vrot.lane.b32.xlu0 %v676, 16
        %v679 = vpop.permute.xlu0 %678
        %vm681 = vcmask 195712
        %682 = vst.msk [vmem:[#allocation2] sm:$0xff] %vm681, %v679
        %683 = vrot.lane.b32.xlu0 %v338, 104
        %v684 = vpop.permute.xlu0 %683
        %685 = vrot.lane.b32.xlu0 %v338, 72
        %v686 = vpop.permute.xlu0 %685
        %v688 = vsel %vm342, %v684, 0
        %v691 = vsel %vm342, %v686, 0
        %693 = vmatprep.subr.bf16.mxu0 0
        %694 = vmatpush1.bf16.xpose.msra.mxu0 %v691
        %695 = vmatprep.subr.bf16.mxu0 0
        %696 = vmatpush1.bf16.xpose.msra.mxu0 0
        %697 = vmatprep.subr.bf16.mxu0 0
        %698 = vmatpush1.bf16.xpose.msra.mxu0 0
        %699 = vmatprep.subr.bf16.mxu0 0
        %700 = vmatpush1.bf16.xpose.msra.mxu0 0
        %701 = vmatprep.subr.bf16.mxu0 0
        %702 = vmatpush1.bf16.xpose.msra.mxu0 0
        %703 = vmatprep.subr.bf16.mxu0 0
        %704 = vmatpush1.bf16.xpose.msra.mxu0 0
        %705 = vmatprep.subr.bf16.mxu0 0
        %706 = vmatpush1.bf16.xpose.msra.mxu0 0
        %707 = vmatprep.subr.bf16.mxu0 0
        %708 = vmatpush1.bf16.xpose.msra.mxu0 0
        %709 = vmatprep.subr.bf16.mxu0 0
        %710 = vmatpush1.bf16.xpose.msra.mxu0 0
        %711 = vmatprep.subr.bf16.mxu0 0
        %712 = vmatpush1.bf16.xpose.msra.mxu0 0
        %713 = vmatprep.subr.bf16.mxu0 0
        %714 = vmatpush1.bf16.xpose.msra.mxu0 0
        %715 = vmatprep.subr.bf16.mxu0 0
        %716 = vmatpush1.bf16.xpose.msra.mxu0 0
        %717 = vmatprep.subr.bf16.mxu0 0
        %718 = vmatpush1.bf16.xpose.msra.mxu0 0
        %719 = vmatprep.subr.bf16.mxu0 0
        %720 = vmatpush1.bf16.xpose.msra.mxu0 0
        %721 = vmatprep.subr.bf16.mxu0 0
        %722 = vmatpush1.bf16.xpose.msra.mxu0 0
        %723 = vmatprep.subr.bf16.mxu0 0
        %724 = vmatpush1.bf16.xpose.msra.mxu0 0
        %725 = vmatprep.mubr.bf16.mxu0 0
        %726 = vmatmul.mubr.bf16.gmra.mrb[0].mxu0 %v688
        %v727 = vpop.f32.mrb[0].mxu0
        %v728 = vadd.f32 0.0, %v727
        %v729 = vpop.f32.mrb[0].mxu0
        %v730 = vpop.f32.mrb[0].mxu0
        %v731 = vpop.f32.mrb[0].mxu0
        %732 = vdwg.mxu0
        %v733 = vsel %vm342, %v728, -inf
        %734 = vmax.xlane.f32.xlu0 %v733
        %v735 = vpop.xlane.xlu0 %734
        %v736 = vsub.f32 %v728, %v735
        %v737 = vmul.f32 %v736, 1.442695
        %v738 = vpow.pop %v737
        %v739 = vsel %vm342, %v738, 0.0
        %740 = vadd.xlane.f32.xlu0 %v739
        %v741 = vpop.xlane.xlu0 %740
        %v742 = vpack.c.bf16 %v738, %v738
        %743 = vrot.lane.b32.xlu0 %v338, 40
        %v744 = vpop.permute.xlu0 %743
        %v746 = vsel %vm342, %v742, 0
        %v749 = vsel %vm404, %v744, 0
        %751 = vmatprep.subr.bf16.mxu0 0
        %752 = vmatpush1.bf16.msra.mxu0 %v749
        %753 = vmatprep.subr.bf16.mxu0 0
        %754 = vmatpush1.bf16.msra.mxu0 0
        %755 = vmatprep.subr.bf16.mxu0 0
        %756 = vmatpush1.bf16.msra.mxu0 0
        %757 = vmatprep.subr.bf16.mxu0 0
        %758 = vmatpush1.bf16.msra.mxu0 0
        %759 = vmatprep.subr.bf16.mxu0 0
        %760 = vmatpush1.bf16.msra.mxu0 0
        %761 = vmatprep.subr.bf16.mxu0 0
        %762 = vmatpush1.bf16.msra.mxu0 0
        %763 = vmatprep.subr.bf16.mxu0 0
        %764 = vmatpush1.bf16.msra.mxu0 0
        %765 = vmatprep.subr.bf16.mxu0 0
        %766 = vmatpush1.bf16.msra.mxu0 0
        %767 = vmatprep.subr.bf16.mxu0 0
        %768 = vmatpush1.bf16.msra.mxu0 0
        %769 = vmatprep.subr.bf16.mxu0 0
        %770 = vmatpush1.bf16.msra.mxu0 0
        %771 = vmatprep.subr.bf16.mxu0 0
        %772 = vmatpush1.bf16.msra.mxu0 0
        %773 = vmatprep.subr.bf16.mxu0 0
        %774 = vmatpush1.bf16.msra.mxu0 0
        %775 = vmatprep.subr.bf16.mxu0 0
        %776 = vmatpush1.bf16.msra.mxu0 0
        %777 = vmatprep.subr.bf16.mxu0 0
        %778 = vmatpush1.bf16.msra.mxu0 0
        %779 = vmatprep.subr.bf16.mxu0 0
        %780 = vmatpush1.bf16.msra.mxu0 0
        %781 = vmatprep.subr.bf16.mxu0 0
        %782 = vmatpush1.bf16.msra.mxu0 0
        %783 = vmatprep.mubr.bf16.mxu0 0
        %784 = vmatmul.mubr.bf16.gmra.mrb[0].mxu0 %v746
        %v785 = vpop.f32.mrb[0].mxu0
        %v786 = vadd.f32 0.0, %v785
        %v787 = vpop.f32.mrb[0].mxu0
        %v788 = vpop.f32.mrb[0].mxu0
        %v789 = vpop.f32.mrb[0].mxu0
        %790 = vdwg.mxu0
        %v791 = vrcp.pop %v741
        %v792 = vmul.f32 %v786, %v791
        %794 = vrot.lane.b32.xlu0 %v792, 24
        %v795 = vpop.permute.xlu0 %794
        %vm797 = vcmask 261312
        %798 = vst.msk [vmem:[#allocation2] sm:$0xff] %vm797, %v795
        %v799 = vld [vmem:[#allocation2] sm:$0xff]
        %v800 = vpack.c.bf16 %v799, %v799
        %v801 = vld [vmem:[#allocation8] sm:$0xf]
        %v802 = vld [vmem:[#allocation8 + $0x4] sm:$0xf]
        %v803 = vld [vmem:[#allocation8 + $0x8] sm:$0xf]
        %v804 = vld [vmem:[#allocation8 + $0xc] sm:$0xf]
        %v805 = vld [vmem:[%s4] sm:$0x1]
        %v807 = vlaneseq
        %v808 = vshrl.u32 %v807, 7
        %v809 = vsub.s32 0, %v808
        %v810 = vrot.slane %v805, %v809
        %v816 = vunpack.c.l.b16 %v801
        %v817 = vunpack.c.l.b16 %v802
        %v818 = vunpack.c.l.b16 %v803
        %v819 = vunpack.c.l.b16 %v804
        %v820 = vpack.c.b16 %v817, %v816
        %v821 = vpack.c.b16 %v819, %v818
        %v825 = vsel %vm294, %v800, 0
        %827 = vmatprep.subr.bf16.mxu0 0
        %828 = vmatpush1.bf16.msra.mxu0 %v820
        %829 = vmatprep.subr.bf16.mxu0 0
        %830 = vmatpush1.bf16.msra.mxu0 %v821
        %831 = vmatprep.subr.bf16.mxu0 0
        %832 = vmatpush1.bf16.msra.mxu0 0
        %833 = vmatprep.subr.bf16.mxu0 0
        %834 = vmatpush1.bf16.msra.mxu0 0
        %835 = vmatprep.subr.bf16.mxu0 0
        %836 = vmatpush1.bf16.msra.mxu0 0
        %837 = vmatprep.subr.bf16.mxu0 0
        %838 = vmatpush1.bf16.msra.mxu0 0
        %839 = vmatprep.subr.bf16.mxu0 0
        %840 = vmatpush1.bf16.msra.mxu0 0
        %841 = vmatprep.subr.bf16.mxu0 0
        %842 = vmatpush1.bf16.msra.mxu0 0
        %843 = vmatprep.subr.bf16.mxu0 0
        %844 = vmatpush1.bf16.msra.mxu0 0
        %845 = vmatprep.subr.bf16.mxu0 0
        %846 = vmatpush1.bf16.msra.mxu0 0
        %847 = vmatprep.subr.bf16.mxu0 0
        %848 = vmatpush1.bf16.msra.mxu0 0
        %849 = vmatprep.subr.bf16.mxu0 0
        %850 = vmatpush1.bf16.msra.mxu0 0
        %851 = vmatprep.subr.bf16.mxu0 0
        %852 = vmatpush1.bf16.msra.mxu0 0
        %853 = vmatprep.subr.bf16.mxu0 0
        %854 = vmatpush1.bf16.msra.mxu0 0
        %855 = vmatprep.subr.bf16.mxu0 0
        %856 = vmatpush1.bf16.msra.mxu0 0
        %857 = vmatprep.subr.bf16.mxu0 0
        %858 = vmatpush1.bf16.msra.mxu0 0
        %859 = vmatprep.mubr.bf16.mxu0 0
        %860 = vmatmul.mubr.bf16.gmra.mrb[0].mxu0 %v825
        %v861 = vpop.f32.mrb[0].mxu0
        %v862 = vadd.f32 %v810, %v861
        %v863 = vpop.f32.mrb[0].mxu0
        %v864 = vpop.f32.mrb[0].mxu0
        %v865 = vpop.f32.mrb[0].mxu0
        %866 = vdwg.mxu0
        %867 = vst.msk [vmem:[%s268] sm:$0xff] %vm294, %v862
        %s868 = sand.u32 %s141, 1
        %s869 = scalar_lea.sflag [#allocation5], %s868
        %s870 = sand.u32 %s141, 1
        %s871 = smul.addr %s870, 8
        %s872 = scalar_lea.vmem [#allocation9], %s871
        // Predicated region
        $region53: #{tpu_custom_call.1} parent=39 // pred_check
          %p873 = pneg %p151
        $region54: #{tpu_custom_call.1} parent=39 // pred_check_branch
          %875 = sbr.rel (%p873) target = $region56
        $region55: #{tpu_custom_call.1} parent=39 // pred_region
          %s877 = ssub.s32 128, 128
          %878 = vsyncadd %s869, %s877
          %s879 = smul.addr %s23, 128
          %s880 = scalar_lea.hbm %s5, %s879
          %s882 = sshll.u32 %s872, 4
          %s883 = int_to_ptr.vmem [resolvable:$true] %s882
          %885 = dma.vmem_to_hbm [thread:$0]  %s883, 128, %s880, %s869
        $region56: #{tpu_custom_call.1} parent=39 // pred_fallthru
          _
      $region40: #{tpu_custom_call.1} parent=5 // pred_fallthru
        _
      %p886 = scmp.le.s32.totalorder 2, %s18
      // Predicated region
      $region57: #{tpu_custom_call.1} parent=5 // pred_check
        %p887 = pneg %p886
      $region58: #{tpu_custom_call.1} parent=5 // pred_check_branch
        %889 = sbr.rel (%p887) target = $region60
      $region59: #{tpu_custom_call.1} parent=5 // pred_region
        %s890 = ssub.s32 %s18, 2
        // Predicated region
        $region61: #{tpu_custom_call.1} parent=59 // pred_check
          %p891 = pneg %p157
        $region62: #{tpu_custom_call.1} parent=59 // pred_check_branch
          %893 = sbr.rel (%p891) target = $region64
        $region63: #{tpu_custom_call.1} parent=59 // pred_region
          %s894 = sand.u32 %s142, 1
          %s895 = scalar_lea.sflag [#allocation5], %s894
          %s896 = sand.u32 %s142, 1
          %s897 = smul.addr %s896, 8
          %s898 = scalar_lea.vmem [#allocation9], %s897
          %899 = dma.done %s895, 128
        $region64: #{tpu_custom_call.1} parent=59 // pred_fallthru
          _
      $region60: #{tpu_custom_call.1} parent=5 // pred_fallthru
        _
    $region6: #{tpu_custom_call.1} parent=1 // loop_footer
      %s22 = sadd.s32 1, %s18
    $region7: #{tpu_custom_call.1} parent=1 // loop_footer_branch
      %17 = sbr.rel target = $region3
    $region8: #{tpu_custom_call.1} parent=1 // loop_exit
      _
    %900 = vsyncpa [#allocation4], 1
    %s901 = scalar_lea.sflag [#allocation4], 1
    %902 = vsyncpa %s901, 1
    %903 = vsyncpa [#allocation7], 1
    %904 = vsyncpa [#allocation5], 1
    %s905 = scalar_lea.sflag [#allocation5], 1
    %906 = vsyncpa %s905, 1

</llo_original>
